<compile_context>
chip_gen: v7x
topology: tpu7x:2x2x1
jax: 0.10.0
libtpu: 0.0.40
codegen_flags: <defaults>
</compile_context>

<pallas_src>
import jax
import jax.numpy as jnp
from jax.experimental import pallas as pl
from jax.experimental.pallas import tpu as pltpu


def _projection_head_kernel(x_ref, w1_ref, b1_ref, w2_ref, b2_ref, o_ref,
                            acc_ref):
    k = pl.program_id(1)

    @pl.when(k == 0)
    def _init():
        acc_ref[...] = jnp.zeros_like(acc_ref)

    # First matmul, accumulated in f32 over the K (input_dim) grid axis.
    acc_ref[...] += jnp.dot(x_ref[...], w1_ref[...],
                            preferred_element_type=jnp.float32)

    @pl.when(k == pl.num_programs(1) - 1)
    def _finalize():
        # Bias + ReLU in place on the f32 accumulator (no extra f32 temp).
        acc_ref[...] = jnp.maximum(
            acc_ref[...] + b1_ref[...].astype(jnp.float32), 0.0)
        # Second matmul: hidden activations cast to the MXU compute dtype
        # (bf16 by default — intentional precision trade-off), f32 accumulate,
        # bias added in f32, stored in the output dtype.
        out = jnp.dot(acc_ref[...].astype(w2_ref.dtype), w2_ref[...],
                      preferred_element_type=jnp.float32)
        o_ref[...] = (out + b2_ref[...].astype(jnp.float32)).astype(o_ref.dtype)


def _round_up(n, m):
    return (n + m - 1) // m * m


def _cdiv(a, b):
    return (a + b - 1) // b


def _pad2d(a, rows, cols):
    r, c = a.shape
    if (r, c) == (rows, cols):
        return a
    return jnp.pad(a, ((0, rows - r), (0, cols - c)))


def _vmem_capacity_bytes():
    try:
        return int(pltpu.get_tpu_info().vmem_capacity_bytes)
    except Exception:
        return 64 * 1024 * 1024  # conservative (v7x per-TC) default


def projection_head_forward(x, w1, b1, w2, b2, *,
                            block_batch=1024, block_k=None,
                            compute_dtype=jnp.bfloat16,
                            vmem_limit_bytes=None,
                            single_buffer_resident=True):
    """Fused Linear -> ReLU -> Linear.

    x : (B, input_dim)
    w1: (input_dim, hidden_dim)   (transposed vs. torch Linear.weight)
    b1: (hidden_dim,) or (1, hidden_dim)
    w2: (hidden_dim, output_dim)
    b2: (output_dim,) or (1, output_dim)
    block_k=None  -> keep W1 fully VMEM-resident when it fits, else stream K.
    compute_dtype -> MXU dtype for x/W1/W2 (default bf16, f32 accumulation).
    """
    out_dtype = x.dtype
    B, K = x.shape
    H = w1.shape[1]
    O = w2.shape[1]
    b1 = b1.reshape(1, H)
    b2 = b2.reshape(1, O)

    if compute_dtype is None:
        compute_dtype = x.dtype
    compute_dtype = jnp.dtype(compute_dtype)
    x = x.astype(compute_dtype)
    w1 = w1.astype(compute_dtype)
    w2 = w2.astype(compute_dtype)

    csz = compute_dtype.itemsize
    osz = jnp.dtype(out_dtype).itemsize

    # --- lane padding (128) -------------------------------------------------
    Kp0 = _round_up(K, 128)
    Hp = _round_up(H, 128)
    Op = _round_up(O, 128)

    # --- batch tile: sublane pack of the compute dtype (8 f32 / 16 bf16),
    # capped so there are >= 2 batch tiles when the batch allows it (both v7x
    # TensorCores get work via the "parallel" batch axis).
    pack = max(8, 32 // csz)
    tm = _round_up(min(block_batch, max(B, 1)), pack)
    if B > pack:
        tm = min(tm, max(pack, _round_up(_cdiv(B, 2), pack)))

    # --- generation-aware VMEM budget (64 MiB/TC on v7x, 128 MiB v5e/v6e) ---
    vmem_cap = _vmem_capacity_bytes()
    budget = int(0.80 * vmem_cap)
    if vmem_limit_bytes is not None:
        budget = min(budget, vmem_limit_bytes)

    def est(tm_, tk_, nk_):
        w1_bufs = 1 if nk_ == 1 else 2
        b = 2 * tm_ * tk_ * csz               # x tile (double-buffered)
        b += w1_bufs * tk_ * Hp * csz         # W1 (resident or K-streamed)
        b += (Hp + Op) * csz                  # b1, b2 (single-buffered)
        b += Hp * Op * csz                    # W2 (resident, single-buffered)
        b += 2 * tm_ * Op * osz               # out tile (double-buffered)
        b += tm_ * Hp * 4                     # f32 accumulator scratch
        b += tm_ * Hp * csz + tm_ * Op * 4    # finalize temporaries
        return b

    # --- K tiling: prefer a fully resident W1 (one DMA for the whole batch) -
    if block_k is None:
        if est(tm, Kp0, 1) <= int(0.7 * budget):
            tk, Kp = Kp0, Kp0
        else:
            tk = min(512, Kp0)
            Kp = _round_up(Kp0, tk)
    else:
        tk = min(_round_up(block_k, 128), Kp0)
        Kp = _round_up(Kp0, tk)
    nk = Kp // tk

    # Auto-shrink tiles if the working set would overflow the VMEM budget.
    while est(tm, tk, nk) > budget:
        if tm > pack:
            tm = max(pack, _round_up(tm // 2, pack))
        elif tk > 128:
            tk = max(128, (tk // 2) // 128 * 128)
            Kp = _round_up(Kp0, tk)
            nk = Kp // tk
        else:
            # TODO(synk): tile the output dim with an extra "parallel" N grid
            # axis for very wide hidden/output dims instead of stopping here.
            break

    Bp = _round_up(B, tm)
    nb = Bp // tm

    xp = _pad2d(x, Bp, Kp)
    w1p = _pad2d(w1, Kp, Hp)
    b1p = _pad2d(b1, 1, Hp)
    w2p = _pad2d(w2, Hp, Op)
    b2p = _pad2d(b2, 1, Op)

    if vmem_limit_bytes is None:
        vmem_limit = max(int(1.15 * est(tm, tk, nk)), 32 * 1024 * 1024)
    else:
        vmem_limit = vmem_limit_bytes
    vmem_limit = min(vmem_limit, int(0.9 * vmem_cap))

    w1_reads = 1 if nk == 1 else nb   # W1 is re-streamed per batch tile if K is tiled
    cost = pl.CostEstimate(
        flops=int(2 * Bp * (Kp * Hp + Hp * Op)),
        transcendentals=0,
        bytes_accessed=int(Bp * Kp * csz + w1_reads * Kp * Hp * csz
                           + (Hp + Op) * csz + Hp * Op * csz
                           + Bp * Op * osz),
    )

    def _build(single_buffer):
        def spec(shape, index_map, resident=False):
            if resident and single_buffer and hasattr(pl, "Buffered"):
                try:
                    return pl.BlockSpec(shape, index_map,
                                        pipeline_mode=pl.Buffered(1))
                except TypeError:
                    pass
            return pl.BlockSpec(shape, index_map)

        return pl.pallas_call(
            _projection_head_kernel,
            out_shape=jax.ShapeDtypeStruct((Bp, Op), out_dtype),
            grid_spec=pltpu.PrefetchScalarGridSpec(
                num_scalar_prefetch=0,
                grid=(nb, nk),  # (batch tiles, K tiles); reduction axis last.
                in_specs=[
                    spec((tm, tk), lambda i, k: (i, k)),                      # x tile
                    spec((tk, Hp), lambda i, k: (k, 0), resident=(nk == 1)),  # W1
                    spec((1, Hp), lambda i, k: (0, 0), resident=True),        # b1
                    spec((Hp, Op), lambda i, k: (0, 0), resident=True),       # W2
                    spec((1, Op), lambda i, k: (0, 0), resident=True),        # b2
                ],
                out_specs=pl.BlockSpec((tm, Op), lambda i, k: (i, 0)),
                scratch_shapes=[pltpu.VMEM((tm, Hp), jnp.float32)],
            ),
            compiler_params=pltpu.CompilerParams(
                dimension_semantics=("parallel", "arbitrary"),
                vmem_limit_bytes=vmem_limit,
            ),
            cost_estimate=cost,
        )

    args = (xp, w1p, b1p, w2p, b2p)
    try:
        out_padded = _build(single_buffer_resident)(*args)
    except Exception:
        if not single_buffer_resident:
            raise
        # Fallback for JAX versions that reject pl.Buffered(1) on these specs.
        out_padded = _build(False)(*args)

    if Bp == B and Op == O:
        return out_padded
    return out_padded[:B, :O]


def init_projection_head_params(key, input_dim, hidden_dim, output_dim,
                                dtype=jnp.float32):
    """Deterministic init mimicking nn.Linear (uniform +-1/sqrt(fan_in)).
    Weights are stored as (in_features, out_features) for the kernel."""
    k1, k2, k3, k4 = jax.random.split(key, 4)
    s1 = 1.0 / jnp.sqrt(input_dim)
    s2 = 1.0 / jnp.sqrt(hidden_dim)
    w1 = jax.random.uniform(k1, (input_dim, hidden_dim), dtype, -s1, s1)
    b1 = jax.random.uniform(k2, (hidden_dim,), dtype, -s1, s1)
    w2 = jax.random.uniform(k3, (hidden_dim, output_dim), dtype, -s2, s2)
    b2 = jax.random.uniform(k4, (output_dim,), dtype, -s2, s2)
    return w1, b1, w2, b2


if __name__ == "__main__":
    key = jax.random.PRNGKey(0)
    kx, kp, kx2, kp2 = jax.random.split(key, 4)

    # Case 1: small module shapes (batch=8, 32 -> 64 -> 16), exact f32 path,
    # fully resident W1 (single-step K axis).
    B, input_dim, hidden_dim, output_dim = 8, 32, 64, 16
    x = jax.random.normal(kx, (B, input_dim), dtype=jnp.float32)
    w1, b1, w2, b2 = init_projection_head_params(
        kp, input_dim, hidden_dim, output_dim)
    out = jax.block_until_ready(
        projection_head_forward(x, w1, b1, w2, b2, compute_dtype=jnp.float32))
    ref = jnp.maximum(x @ w1 + b1[None, :], 0.0) @ w2 + b2[None, :]
    assert out.shape == (B, output_dim)
    assert jnp.allclose(out, ref, atol=1e-5, rtol=1e-5)

    # Case 2: ragged batch + forced K streaming (grid (3, 2)) + default bf16
    # MXU compute with f32 accumulation.
    B2, in2, hid2, od2 = 36, 256, 96, 40
    x2 = jax.random.normal(kx2, (B2, in2), dtype=jnp.float32)
    p2 = init_projection_head_params(kp2, in2, hid2, od2)
    out2 = jax.block_until_ready(
        projection_head_forward(x2, *p2, block_batch=16, block_k=128))
    ref2 = jnp.maximum(x2 @ p2[0] + p2[1][None, :], 0.0) @ p2[2] + p2[3][None, :]
    assert out2.shape == (B2, od2)
    assert jnp.allclose(out2, ref2, atol=5e-2, rtol=5e-2)

    print("KERNEL_OK")
</pallas_src>

<mosaic_0001>
module attributes {stable_mosaic.version = 11 : i64} {
  func.func @_projection_head_kernel(%arg0: i32, %arg1: i32, %arg2: memref<8x128xf32, #tpu.memory_space<vmem>>, %arg3: memref<128x128xf32, #tpu.memory_space<vmem>>, %arg4: memref<1x128xf32, #tpu.memory_space<vmem>>, %arg5: memref<128x128xf32, #tpu.memory_space<vmem>>, %arg6: memref<1x128xf32, #tpu.memory_space<vmem>>, %arg7: memref<8x128xf32, #tpu.memory_space<vmem>>, %arg8: memref<8x128xf32, #tpu.memory_space<vmem>>) attributes {dimension_semantics = [#tpu.dimension_semantics<parallel>, #tpu.dimension_semantics<arbitrary>], iteration_bounds = array<i64: 1, 1>, scalar_prefetch = 0 : i64, scratch_operands = 1 : i64, tpu.core_type = #tpu.core_type<tc>, window_params = [{transform_indices = @transform_0, window_bounds = array<i64: 8, 128>}, {pipeline_mode = #tpu.pipeline_mode<synchronous>, transform_indices = @transform_1, window_bounds = array<i64: 128, 128>}, {pipeline_mode = #tpu.pipeline_mode<synchronous>, transform_indices = @transform_2, window_bounds = array<i64: 1, 128>}, {pipeline_mode = #tpu.pipeline_mode<synchronous>, transform_indices = @transform_3, window_bounds = array<i64: 128, 128>}, {pipeline_mode = #tpu.pipeline_mode<synchronous>, transform_indices = @transform_4, window_bounds = array<i64: 1, 128>}, {transform_indices = @transform_5, window_bounds = array<i64: 8, 128>}]} {
    %c0_i32 = arith.constant 0 : i32
    %0 = arith.cmpi eq, %arg1, %c0_i32 : i32
    %1 = arith.extui %0 : i1 to i32
    %c0_i32_0 = arith.constant 0 : i32
    %2 = arith.cmpi ne, %1, %c0_i32_0 : i32
    scf.if %2 {
      %cst_10 = arith.constant 0.000000e+00 : f32
      %12 = vector.broadcast %cst_10 : f32 to vector<8x128xf32>
      %c0_11 = arith.constant 0 : index
      %c0_12 = arith.constant 0 : index
      %13 = vector.load %arg8[%c0_11, %c0_12] : memref<8x128xf32, #tpu.memory_space<vmem>>, vector<8x128xf32>
      tpu.vector_store %arg8[%c0_11, %c0_12], %12 {strides = array<i32>} : memref<8x128xf32, #tpu.memory_space<vmem>>, vector<8x128xf32>,
    } else {
    }
    %c0 = arith.constant 0 : index
    %c0_1 = arith.constant 0 : index
    %3 = vector.load %arg8[%c0, %c0_1] : memref<8x128xf32, #tpu.memory_space<vmem>>, vector<8x128xf32>
    %c0_2 = arith.constant 0 : index
    %c0_3 = arith.constant 0 : index
    %4 = vector.load %arg2[%c0_2, %c0_3] : memref<8x128xf32, #tpu.memory_space<vmem>>, vector<8x128xf32>
    %c0_4 = arith.constant 0 : index
    %c0_5 = arith.constant 0 : index
    %5 = vector.load %arg3[%c0_4, %c0_5] : memref<128x128xf32, #tpu.memory_space<vmem>>, vector<128x128xf32>
    %cst = arith.constant dense<0.000000e+00> : vector<8x128xf32>
    %6 = tpu.matmul %4, %5, %cst {dimension_numbers = #tpu.dot_dimension_numbers<[1], [0], [0], [1], [0, 0, 1, 1], [], []>} : vector<8x128xf32>, vector<128x128xf32>, vector<8x128xf32> -> vector<8x128xf32>
    %7 = arith.addf %3, %6 : vector<8x128xf32>
    %c0_6 = arith.constant 0 : index
    %c0_7 = arith.constant 0 : index
    %8 = vector.load %arg8[%c0_6, %c0_7] : memref<8x128xf32, #tpu.memory_space<vmem>>, vector<8x128xf32>
    tpu.vector_store %arg8[%c0_6, %c0_7], %7 {strides = array<i32>} : memref<8x128xf32, #tpu.memory_space<vmem>>, vector<8x128xf32>,
    %c0_i32_8 = arith.constant 0 : i32
    %9 = arith.cmpi eq, %arg1, %c0_i32_8 : i32
    %10 = arith.extui %9 : i1 to i32
    %c0_i32_9 = arith.constant 0 : i32
    %11 = arith.cmpi ne, %10, %c0_i32_9 : i32
    scf.if %11 {
      %c0_10 = arith.constant 0 : index
      %c0_11 = arith.constant 0 : index
      %12 = vector.load %arg8[%c0_10, %c0_11] : memref<8x128xf32, #tpu.memory_space<vmem>>, vector<8x128xf32>
      %c0_12 = arith.constant 0 : index
      %c0_13 = arith.constant 0 : index
      %13 = vector.load %arg4[%c0_12, %c0_13] : memref<1x128xf32, #tpu.memory_space<vmem>>, vector<1x128xf32>
      %14 = vector.broadcast %13 : vector<1x128xf32> to vector<8x128xf32>
      %15 = arith.addf %12, %14 : vector<8x128xf32>
      %cst_14 = arith.constant 0.000000e+00 : f32
      %16 = vector.broadcast %cst_14 : f32 to vector<8x128xf32>
      %17 = arith.maximumf %15, %16 : vector<8x128xf32>
      %c0_15 = arith.constant 0 : index
      %c0_16 = arith.constant 0 : index
      %18 = vector.load %arg8[%c0_15, %c0_16] : memref<8x128xf32, #tpu.memory_space<vmem>>, vector<8x128xf32>
      tpu.vector_store %arg8[%c0_15, %c0_16], %17 {strides = array<i32>} : memref<8x128xf32, #tpu.memory_space<vmem>>, vector<8x128xf32>,
      %c0_17 = arith.constant 0 : index
      %c0_18 = arith.constant 0 : index
      %19 = vector.load %arg8[%c0_17, %c0_18] : memref<8x128xf32, #tpu.memory_space<vmem>>, vector<8x128xf32>
      %c0_19 = arith.constant 0 : index
      %c0_20 = arith.constant 0 : index
      %20 = vector.load %arg5[%c0_19, %c0_20] : memref<128x128xf32, #tpu.memory_space<vmem>>, vector<128x128xf32>
      %cst_21 = arith.constant dense<0.000000e+00> : vector<8x128xf32>
      %21 = tpu.matmul %19, %20, %cst_21 {dimension_numbers = #tpu.dot_dimension_numbers<[1], [0], [0], [1], [0, 0, 1, 1], [], []>} : vector<8x128xf32>, vector<128x128xf32>, vector<8x128xf32> -> vector<8x128xf32>
      %c0_22 = arith.constant 0 : index
      %c0_23 = arith.constant 0 : index
      %22 = vector.load %arg6[%c0_22, %c0_23] : memref<1x128xf32, #tpu.memory_space<vmem>>, vector<1x128xf32>
      %23 = vector.broadcast %22 : vector<1x128xf32> to vector<8x128xf32>
      %24 = arith.addf %21, %23 : vector<8x128xf32>
      %c0_24 = arith.constant 0 : index
      %c0_25 = arith.constant 0 : index
      %25 = vector.load %arg7[%c0_24, %c0_25] : memref<8x128xf32, #tpu.memory_space<vmem>>, vector<8x128xf32>
      tpu.vector_store %arg7[%c0_24, %c0_25], %24 {strides = array<i32>} : memref<8x128xf32, #tpu.memory_space<vmem>>, vector<8x128xf32>,
    } else {
    }
    return
  }
  func.func @transform_0(%arg0: i32, %arg1: i32) -> (i32, i32) {
    %c0_i32 = arith.constant 0 : i32
    return %arg0, %arg1 : i32, i32
  }
  func.func @transform_1(%arg0: i32, %arg1: i32) -> (i32, i32) {
    %c0_i32 = arith.constant 0 : i32
    %c0_i32_0 = arith.constant 0 : i32
    return %arg1, %c0_i32 : i32, i32
  }
  func.func @transform_2(%arg0: i32, %arg1: i32) -> (i32, i32) {
    %c0_i32 = arith.constant 0 : i32
    %c0_i32_0 = arith.constant 0 : i32
    %c0_i32_1 = arith.constant 0 : i32
    return %c0_i32, %c0_i32_0 : i32, i32
  }
  func.func @transform_3(%arg0: i32, %arg1: i32) -> (i32, i32) {
    %c0_i32 = arith.constant 0 : i32
    %c0_i32_0 = arith.constant 0 : i32
    %c0_i32_1 = arith.constant 0 : i32
    return %c0_i32, %c0_i32_0 : i32, i32
  }
  func.func @transform_4(%arg0: i32, %arg1: i32) -> (i32, i32) {
    %c0_i32 = arith.constant 0 : i32
    %c0_i32_0 = arith.constant 0 : i32
    %c0_i32_1 = arith.constant 0 : i32
    return %c0_i32, %c0_i32_0 : i32, i32
  }
  func.func @transform_5(%arg0: i32, %arg1: i32) -> (i32, i32) {
    %c0_i32 = arith.constant 0 : i32
    %c0_i32_0 = arith.constant 0 : i32
    return %arg0, %c0_i32 : i32, i32
  }
}

module attributes {stable_mosaic.version = 11 : i64} {
  func.func @_projection_head_kernel(%arg0: i32, %arg1: i32, %arg2: memref<8x128xf32, #tpu.memory_space<vmem>>, %arg3: memref<128x128xf32, #tpu.memory_space<vmem>>, %arg4: memref<1x128xf32, #tpu.memory_space<vmem>>, %arg5: memref<128x128xf32, #tpu.memory_space<vmem>>, %arg6: memref<1x128xf32, #tpu.memory_space<vmem>>, %arg7: memref<8x128xf32, #tpu.memory_space<vmem>>, %arg8: memref<8x128xf32, #tpu.memory_space<vmem>>) attributes {dimension_semantics = [#tpu.dimension_semantics<parallel>, #tpu.dimension_semantics<arbitrary>], iteration_bounds = array<i64: 1, 1>, scalar_prefetch = 0 : i64, scratch_operands = 1 : i64, tpu.core_type = #tpu.core_type<tc>, window_params = [{transform_indices = @transform_0, window_bounds = array<i64: 8, 128>}, {transform_indices = @transform_1, window_bounds = array<i64: 128, 128>}, {pipeline_mode = #tpu.pipeline_mode<synchronous>, transform_indices = @transform_2, window_bounds = array<i64: 1, 128>}, {pipeline_mode = #tpu.pipeline_mode<synchronous>, transform_indices = @transform_3, window_bounds = array<i64: 128, 128>}, {pipeline_mode = #tpu.pipeline_mode<synchronous>, transform_indices = @transform_4, window_bounds = array<i64: 1, 128>}, {transform_indices = @transform_5, window_bounds = array<i64: 8, 128>}]} {
    %c0_i32 = arith.constant 0 : i32
    %0 = arith.cmpi eq, %arg1, %c0_i32 : i32
    %1 = arith.extui %0 : i1 to i32
    %c0_i32_0 = arith.constant 0 : i32
    %2 = arith.cmpi ne, %1, %c0_i32_0 : i32
    scf.if %2 {
      %cst_10 = arith.constant 0.000000e+00 : f32
      %12 = vector.broadcast %cst_10 : f32 to vector<8x128xf32>
      %c0_11 = arith.constant 0 : index
      %c0_12 = arith.constant 0 : index
      %13 = vector.load %arg8[%c0_11, %c0_12] : memref<8x128xf32, #tpu.memory_space<vmem>>, vector<8x128xf32>
      tpu.vector_store %arg8[%c0_11, %c0_12], %12 {strides = array<i32>} : memref<8x128xf32, #tpu.memory_space<vmem>>, vector<8x128xf32>,
    } else {
    }
    %c0 = arith.constant 0 : index
    %c0_1 = arith.constant 0 : index
    %3 = vector.load %arg8[%c0, %c0_1] : memref<8x128xf32, #tpu.memory_space<vmem>>, vector<8x128xf32>
    %c0_2 = arith.constant 0 : index
    %c0_3 = arith.constant 0 : index
    %4 = vector.load %arg2[%c0_2, %c0_3] : memref<8x128xf32, #tpu.memory_space<vmem>>, vector<8x128xf32>
    %c0_4 = arith.constant 0 : index
    %c0_5 = arith.constant 0 : index
    %5 = vector.load %arg3[%c0_4, %c0_5] : memref<128x128xf32, #tpu.memory_space<vmem>>, vector<128x128xf32>
    %cst = arith.constant dense<0.000000e+00> : vector<8x128xf32>
    %6 = tpu.matmul %4, %5, %cst {dimension_numbers = #tpu.dot_dimension_numbers<[1], [0], [0], [1], [0, 0, 1, 1], [], []>} : vector<8x128xf32>, vector<128x128xf32>, vector<8x128xf32> -> vector<8x128xf32>
    %7 = arith.addf %3, %6 : vector<8x128xf32>
    %c0_6 = arith.constant 0 : index
    %c0_7 = arith.constant 0 : index
    %8 = vector.load %arg8[%c0_6, %c0_7] : memref<8x128xf32, #tpu.memory_space<vmem>>, vector<8x128xf32>
    tpu.vector_store %arg8[%c0_6, %c0_7], %7 {strides = array<i32>} : memref<8x128xf32, #tpu.memory_space<vmem>>, vector<8x128xf32>,
    %c0_i32_8 = arith.constant 0 : i32
    %9 = arith.cmpi eq, %arg1, %c0_i32_8 : i32
    %10 = arith.extui %9 : i1 to i32
    %c0_i32_9 = arith.constant 0 : i32
    %11 = arith.cmpi ne, %10, %c0_i32_9 : i32
    scf.if %11 {
      %c0_10 = arith.constant 0 : index
      %c0_11 = arith.constant 0 : index
      %12 = vector.load %arg8[%c0_10, %c0_11] : memref<8x128xf32, #tpu.memory_space<vmem>>, vector<8x128xf32>
      %c0_12 = arith.constant 0 : index
      %c0_13 = arith.constant 0 : index
      %13 = vector.load %arg4[%c0_12, %c0_13] : memref<1x128xf32, #tpu.memory_space<vmem>>, vector<1x128xf32>
      %14 = vector.broadcast %13 : vector<1x128xf32> to vector<8x128xf32>
      %15 = arith.addf %12, %14 : vector<8x128xf32>
      %cst_14 = arith.constant 0.000000e+00 : f32
      %16 = vector.broadcast %cst_14 : f32 to vector<8x128xf32>
      %17 = arith.maximumf %15, %16 : vector<8x128xf32>
      %c0_15 = arith.constant 0 : index
      %c0_16 = arith.constant 0 : index
      %18 = vector.load %arg8[%c0_15, %c0_16] : memref<8x128xf32, #tpu.memory_space<vmem>>, vector<8x128xf32>
      tpu.vector_store %arg8[%c0_15, %c0_16], %17 {strides = array<i32>} : memref<8x128xf32, #tpu.memory_space<vmem>>, vector<8x128xf32>,
      %c0_17 = arith.constant 0 : index
      %c0_18 = arith.constant 0 : index
      %19 = vector.load %arg8[%c0_17, %c0_18] : memref<8x128xf32, #tpu.memory_space<vmem>>, vector<8x128xf32>
      %c0_19 = arith.constant 0 : index
      %c0_20 = arith.constant 0 : index
      %20 = vector.load %arg5[%c0_19, %c0_20] : memref<128x128xf32, #tpu.memory_space<vmem>>, vector<128x128xf32>
      %cst_21 = arith.constant dense<0.000000e+00> : vector<8x128xf32>
      %21 = tpu.matmul %19, %20, %cst_21 {dimension_numbers = #tpu.dot_dimension_numbers<[1], [0], [0], [1], [0, 0, 1, 1], [], []>} : vector<8x128xf32>, vector<128x128xf32>, vector<8x128xf32> -> vector<8x128xf32>
      %c0_22 = arith.constant 0 : index
      %c0_23 = arith.constant 0 : index
      %22 = vector.load %arg6[%c0_22, %c0_23] : memref<1x128xf32, #tpu.memory_space<vmem>>, vector<1x128xf32>
      %23 = vector.broadcast %22 : vector<1x128xf32> to vector<8x128xf32>
      %24 = arith.addf %21, %23 : vector<8x128xf32>
      %c0_24 = arith.constant 0 : index
      %c0_25 = arith.constant 0 : index
      %25 = vector.load %arg7[%c0_24, %c0_25] : memref<8x128xf32, #tpu.memory_space<vmem>>, vector<8x128xf32>
      tpu.vector_store %arg7[%c0_24, %c0_25], %24 {strides = array<i32>} : memref<8x128xf32, #tpu.memory_space<vmem>>, vector<8x128xf32>,
    } else {
    }
    return
  }
  func.func @transform_0(%arg0: i32, %arg1: i32) -> (i32, i32) {
    %c0_i32 = arith.constant 0 : i32
    return %arg0, %arg1 : i32, i32
  }
  func.func @transform_1(%arg0: i32, %arg1: i32) -> (i32, i32) {
    %c0_i32 = arith.constant 0 : i32
    %c0_i32_0 = arith.constant 0 : i32
    return %arg1, %c0_i32 : i32, i32
  }
  func.func @transform_2(%arg0: i32, %arg1: i32) -> (i32, i32) {
    %c0_i32 = arith.constant 0 : i32
    %c0_i32_0 = arith.constant 0 : i32
    %c0_i32_1 = arith.constant 0 : i32
    return %c0_i32, %c0_i32_0 : i32, i32
  }
  func.func @transform_3(%arg0: i32, %arg1: i32) -> (i32, i32) {
    %c0_i32 = arith.constant 0 : i32
    %c0_i32_0 = arith.constant 0 : i32
    %c0_i32_1 = arith.constant 0 : i32
    return %c0_i32, %c0_i32_0 : i32, i32
  }
  func.func @transform_4(%arg0: i32, %arg1: i32) -> (i32, i32) {
    %c0_i32 = arith.constant 0 : i32
    %c0_i32_0 = arith.constant 0 : i32
    %c0_i32_1 = arith.constant 0 : i32
    return %c0_i32, %c0_i32_0 : i32, i32
  }
  func.func @transform_5(%arg0: i32, %arg1: i32) -> (i32, i32) {
    %c0_i32 = arith.constant 0 : i32
    %c0_i32_0 = arith.constant 0 : i32
    return %arg0, %c0_i32 : i32, i32
  }
}

</mosaic_0001>

<llo_original>
// kernel: tpu_custom_call.1
$region0: #{tpu_custom_call.1}
  #allocation0 [shape = 'u32[]', space=smem, size = 0x4, offset = 0x4, fixed_abs, tag = 'smem constant byte address 0x4 - core index']
  #allocation1 [shape = 'u32[144,128]{1,0:T(1,128)}', space=vmem, size = 0x12000, scoped, tag = 'internal scratch']
  #allocation2 [shape = 'f32[8,128]{1,0:T(8,128)}', space=vmem, size = 0x1000, scoped, tag = 'scratch operand']
  %s0 = inlined_call_operand.hbm [shape: f32[8,128], index: 0, kind: input, shape index: {}]
  %s1 = inlined_call_operand.hbm [shape: f32[128,128], index: 1, kind: input, shape index: {}]
  %s2 = inlined_call_operand.vmem [shape: f32[1,128], index: 2, kind: input, shape index: {}]
  %s3 = inlined_call_operand.hbm [shape: f32[128,128], index: 3, kind: input, shape index: {}]
  %s4 = inlined_call_operand.vmem [shape: f32[1,128], index: 4, kind: input, shape index: {}]
  %s5 = inlined_call_operand.hbm [shape: f32[8,128], index: 5, kind: output, shape index: {}]
  %s6 = sld [smem:[#allocation0]]
  $region50: #{tpu_custom_call.1} parent=0
    _
  %s8 = ssub.s32 1, %s6
  %s9 = scalar_select 0, %s8, %s6
  $region1: #{tpu_custom_call.1} parent=0
    #allocation3 [shape = 'u8[4096]{0}', space=vmem, size = 0x1000, scoped, tag = 'input window, operand 0, single buffered']
    #allocation4 [shape = 's32[1]{0}', space=sflag, size = 0x4, scoped, tag = 'scoped memory for tpu_custom_call.1']
    #allocation5 [shape = 's32[1]{0}', space=sflag, size = 0x4, scoped, tag = 'scoped memory for tpu_custom_call.1']
    #allocation6 [shape = 'u8[65536]{0}', space=vmem, size = 0x10000, scoped, tag = 'input window, operand 1, single buffered']
    #allocation7 [shape = 's32[1]{0}', space=sflag, size = 0x4, scoped, tag = 'scoped memory for tpu_custom_call.1']
    #allocation8 [shape = 'u8[65536]{0}', space=vmem, size = 0x10000, scoped, tag = 'input window, operand 3, single buffered']
    #allocation9 [shape = 'u8[4096]{0}', space=vmem, size = 0x1000, scoped, tag = 'output window, operand 0, single buffered']
    %10 = vsyncpa [#allocation4], 0
    %11 = vsyncpa [#allocation7], 0
    %12 = vsyncpa [#allocation5], 0
    // Predicated region
    $region2: #{tpu_custom_call.1} parent=1 // pred_check
      _
    $region3: #{tpu_custom_call.1} parent=1 // pred_check_branch
      %14 = sbr.rel (0) target = $region5
    $region4: #{tpu_custom_call.1} parent=1 // pred_region
      %s16 = ssub.s32 128, 128
      %17 = vsyncadd [#allocation4], %s16
      %s19 = sshll.u32 [#allocation3], 4
      %s20 = int_to_ptr.vmem [resolvable:$true] %s19
      %22 = dma.hbm_to_vmem [thread:$0]  %s0, 128, %s20, [#allocation4]
    $region5: #{tpu_custom_call.1} parent=1 // pred_fallthru
      _
    // Predicated region
    $region6: #{tpu_custom_call.1} parent=1 // pred_check
      _
    $region7: #{tpu_custom_call.1} parent=1 // pred_check_branch
      %24 = sbr.rel (0) target = $region9
    $region8: #{tpu_custom_call.1} parent=1 // pred_region
      %s26 = ssub.s32 2048, 2048
      %27 = vsyncadd [#allocation7], %s26
      %s28 = sshll.u32 [#allocation6], 4
      %s29 = int_to_ptr.vmem [resolvable:$true] %s28
      %34 = dma.hbm_to_vmem [thread:$0]  %s1, 2048, %s29, [#allocation7], 128, 128, 8
    $region9: #{tpu_custom_call.1} parent=1 // pred_fallthru
      _
    // Predicated region
    $region10: #{tpu_custom_call.1} parent=1 // pred_check
      _
    $region11: #{tpu_custom_call.1} parent=1 // pred_check_branch
      %36 = sbr.rel (0) target = $region13
    $region12: #{tpu_custom_call.1} parent=1 // pred_region
      _
    $region13: #{tpu_custom_call.1} parent=1 // pred_fallthru
      _
    // Predicated region
    $region14: #{tpu_custom_call.1} parent=1 // pred_check
      _
    $region15: #{tpu_custom_call.1} parent=1 // pred_check_branch
      %38 = sbr.rel (0) target = $region17
    $region16: #{tpu_custom_call.1} parent=1 // pred_region
      %s40 = ssub.s32 2048, 2048
      %41 = vsyncadd [#allocation7], %s40
      %s42 = sshll.u32 [#allocation8], 4
      %s43 = int_to_ptr.vmem [resolvable:$true] %s42
      %48 = dma.hbm_to_vmem [thread:$0]  %s3, 2048, %s43, [#allocation7], 128, 128, 8
    $region17: #{tpu_custom_call.1} parent=1 // pred_fallthru
      _
    // Predicated region
    $region18: #{tpu_custom_call.1} parent=1 // pred_check
      _
    $region19: #{tpu_custom_call.1} parent=1 // pred_check_branch
      %50 = sbr.rel (0) target = $region21
    $region20: #{tpu_custom_call.1} parent=1 // pred_region
      _
    $region21: #{tpu_custom_call.1} parent=1 // pred_fallthru
      _
    // Predicated region
    $region22: #{tpu_custom_call.1} parent=1 // pred_check
      _
    $region23: #{tpu_custom_call.1} parent=1 // pred_check_branch
      %52 = sbr.rel (0) target = $region25
    $region24: #{tpu_custom_call.1} parent=1 // pred_region
      %53 = dma.done [#allocation4], 128
    $region25: #{tpu_custom_call.1} parent=1 // pred_fallthru
      _
    // Predicated region
    $region26: #{tpu_custom_call.1} parent=1 // pred_check
      _
    $region27: #{tpu_custom_call.1} parent=1 // pred_check_branch
      %55 = sbr.rel (0) target = $region29
    $region28: #{tpu_custom_call.1} parent=1 // pred_region
      %56 = dma.done [#allocation7], 2048
    $region29: #{tpu_custom_call.1} parent=1 // pred_fallthru
      _
    // Predicated region
    $region30: #{tpu_custom_call.1} parent=1 // pred_check
      _
    $region31: #{tpu_custom_call.1} parent=1 // pred_check_branch
      %58 = sbr.rel (0) target = $region33
    $region32: #{tpu_custom_call.1} parent=1 // pred_region
      %59 = dma.done [#allocation7], 2048
    $region33: #{tpu_custom_call.1} parent=1 // pred_fallthru
      _
    %p60 = scmp.eq.s32.totalorder 0, 0
    // Predicated region
    $region34: #{tpu_custom_call.1} parent=1 // pred_check
      %p61 = pneg %p60
    $region35: #{tpu_custom_call.1} parent=1 // pred_check_branch
      %63 = sbr.rel (%p61) target = $region37
    $region36: #{tpu_custom_call.1} parent=1 // pred_region
      %64 = vst [vmem:[#allocation2] sm:$0xff] 0.0
    $region37: #{tpu_custom_call.1} parent=1 // pred_fallthru
      _
    %v65 = vld [vmem:[#allocation2] sm:$0xff]
    %v66 = vld [vmem:[#allocation3] sm:$0xff]
    %v67 = vld [vmem:[#allocation6] sm:$0xff]
    %v68 = vld [vmem:[#allocation6 + $0x8] sm:$0xff]
    %v69 = vld [vmem:[#allocation6 + $0x10] sm:$0xff]
    %v70 = vld [vmem:[#allocation6 + $0x18] sm:$0xff]
    %v71 = vld [vmem:[#allocation6 + $0x20] sm:$0xff]
    %v72 = vld [vmem:[#allocation6 + $0x28] sm:$0xff]
    %v73 = vld [vmem:[#allocation6 + $0x30] sm:$0xff]
    %v74 = vld [vmem:[#allocation6 + $0x38] sm:$0xff]
    %v75 = vld [vmem:[#allocation6 + $0x40] sm:$0xff]
    %v76 = vld [vmem:[#allocation6 + $0x48] sm:$0xff]
    %v77 = vld [vmem:[#allocation6 + $0x50] sm:$0xff]
    %v78 = vld [vmem:[#allocation6 + $0x58] sm:$0xff]
    %v79 = vld [vmem:[#allocation6 + $0x60] sm:$0xff]
    %v80 = vld [vmem:[#allocation6 + $0x68] sm:$0xff]
    %v81 = vld [vmem:[#allocation6 + $0x70] sm:$0xff]
    %v82 = vld [vmem:[#allocation6 + $0x78] sm:$0xff]
    %83 = vmatprep.subr.mxu0 0.0
    %84 = vmatpush1.msra.mxu0 %v67
    %85 = vmatprep.subr.mxu0 0.0
    %86 = vmatpush1.msra.mxu0 %v68
    %87 = vmatprep.subr.mxu0 0.0
    %88 = vmatpush1.msra.mxu0 %v69
    %89 = vmatprep.subr.mxu0 0.0
    %90 = vmatpush1.msra.mxu0 %v70
    %91 = vmatprep.subr.mxu0 0.0
    %92 = vmatpush1.msra.mxu0 %v71
    %93 = vmatprep.subr.mxu0 0.0
    %94 = vmatpush1.msra.mxu0 %v72
    %95 = vmatprep.subr.mxu0 0.0
    %96 = vmatpush1.msra.mxu0 %v73
    %97 = vmatprep.subr.mxu0 0.0
    %98 = vmatpush1.msra.mxu0 %v74
    %99 = vmatprep.subr.mxu0 0.0
    %100 = vmatpush1.msra.mxu0 %v75
    %101 = vmatprep.subr.mxu0 0.0
    %102 = vmatpush1.msra.mxu0 %v76
    %103 = vmatprep.subr.mxu0 0.0
    %104 = vmatpush1.msra.mxu0 %v77
    %105 = vmatprep.subr.mxu0 0.0
    %106 = vmatpush1.msra.mxu0 %v78
    %107 = vmatprep.subr.mxu0 0.0
    %108 = vmatpush1.msra.mxu0 %v79
    %109 = vmatprep.subr.mxu0 0.0
    %110 = vmatpush1.msra.mxu0 %v80
    %111 = vmatprep.subr.mxu0 0.0
    %112 = vmatpush1.msra.mxu0 %v81
    %113 = vmatprep.subr.mxu0 0.0
    %114 = vmatpush1.msra.mxu0 %v82
    %115 = vmatprep.subr.mxu0 0.0
    %116 = vmatpush1.msra.mxu0 0.0
    %117 = vmatprep.subr.mxu0 0.0
    %118 = vmatpush1.msra.mxu0 0.0
    %119 = vmatprep.subr.mxu0 0.0
    %120 = vmatpush1.msra.mxu0 0.0
    %121 = vmatprep.subr.mxu0 0.0
    %122 = vmatpush1.msra.mxu0 0.0
    %123 = vmatprep.subr.mxu0 0.0
    %124 = vmatpush1.msra.mxu0 0.0
    %125 = vmatprep.subr.mxu0 0.0
    %126 = vmatpush1.msra.mxu0 0.0
    %127 = vmatprep.subr.mxu0 0.0
    %128 = vmatpush1.msra.mxu0 0.0
    %129 = vmatprep.subr.mxu0 0.0
    %130 = vmatpush1.msra.mxu0 0.0
    %131 = vmatprep.subr.mxu0 0.0
    %132 = vmatpush1.msra.mxu0 0.0
    %133 = vmatprep.subr.mxu0 0.0
    %134 = vmatpush1.msra.mxu0 0.0
    %135 = vmatprep.subr.mxu0 0.0
    %136 = vmatpush1.msra.mxu0 0.0
    %137 = vmatprep.subr.mxu0 0.0
    %138 = vmatpush1.msra.mxu0 0.0
    %139 = vmatprep.subr.mxu0 0.0
    %140 = vmatpush1.msra.mxu0 0.0
    %141 = vmatprep.subr.mxu0 0.0
    %142 = vmatpush1.msra.mxu0 0.0
    %143 = vmatprep.subr.mxu0 0.0
    %144 = vmatpush1.msra.mxu0 0.0
    %145 = vmatprep.subr.mxu0 0.0
    %146 = vmatpush1.msra.mxu0 0.0
    %147 = vmatprep.mubr.f32.mxu0 0.0
    %148 = vmatmul.mubr.f32.gmra.mrb[0].mxu0 %v66
    %v149 = vpop.f32.mrb[0].mxu0
    %v150 = vadd.f32 0.0, %v149
    %v151 = vpop.f32.mrb[0].mxu0
    %152 = vdwg.mxu0
    %v153 = vadd.f32 %v65, %v150
    %154 = vst [vmem:[#allocation2] sm:$0xff] %v153
    // Predicated region
    $region38: #{tpu_custom_call.1} parent=1 // pred_check
      %p155 = pneg %p60
    $region39: #{tpu_custom_call.1} parent=1 // pred_check_branch
      %157 = sbr.rel (%p155) target = $region41
    $region40: #{tpu_custom_call.1} parent=1 // pred_region
      %v158 = vld [vmem:[#allocation2] sm:$0xff]
      %v159 = vld [vmem:[%s2] sm:$0x1]
      %v161 = vlaneseq
      %v162 = vshrl.u32 %v161, 7
      %v163 = vsub.s32 0, %v162
      %v164 = vrot.slane %v159, %v163
      %v166 = vadd.f32 %v158, %v164
      %v167 = vmax.f32 %v166, 0.0
      %168 = vst [vmem:[#allocation2] sm:$0xff] %v167
      %v169 = vld [vmem:[#allocation2] sm:$0xff]
      %v170 = vld [vmem:[#allocation8] sm:$0xff]
      %v171 = vld [vmem:[#allocation8 + $0x8] sm:$0xff]
      %v172 = vld [vmem:[#allocation8 + $0x10] sm:$0xff]
      %v173 = vld [vmem:[#allocation8 + $0x18] sm:$0xff]
      %v174 = vld [vmem:[#allocation8 + $0x20] sm:$0xff]
      %v175 = vld [vmem:[#allocation8 + $0x28] sm:$0xff]
      %v176 = vld [vmem:[#allocation8 + $0x30] sm:$0xff]
      %v177 = vld [vmem:[#allocation8 + $0x38] sm:$0xff]
      %v178 = vld [vmem:[#allocation8 + $0x40] sm:$0xff]
      %v179 = vld [vmem:[#allocation8 + $0x48] sm:$0xff]
      %v180 = vld [vmem:[#allocation8 + $0x50] sm:$0xff]
      %v181 = vld [vmem:[#allocation8 + $0x58] sm:$0xff]
      %v182 = vld [vmem:[#allocation8 + $0x60] sm:$0xff]
      %v183 = vld [vmem:[#allocation8 + $0x68] sm:$0xff]
      %v184 = vld [vmem:[#allocation8 + $0x70] sm:$0xff]
      %v185 = vld [vmem:[#allocation8 + $0x78] sm:$0xff]
      %v186 = vld [vmem:[%s4] sm:$0x1]
      %v188 = vlaneseq
      %v189 = vshrl.u32 %v188, 7
      %v190 = vsub.s32 0, %v189
      %v191 = vrot.slane %v186, %v190
      %193 = vmatprep.subr.mxu0 0.0
      %194 = vmatpush1.msra.mxu0 %v170
      %195 = vmatprep.subr.mxu0 0.0
      %196 = vmatpush1.msra.mxu0 %v171
      %197 = vmatprep.subr.mxu0 0.0
      %198 = vmatpush1.msra.mxu0 %v172
      %199 = vmatprep.subr.mxu0 0.0
      %200 = vmatpush1.msra.mxu0 %v173
      %201 = vmatprep.subr.mxu0 0.0
      %202 = vmatpush1.msra.mxu0 %v174
      %203 = vmatprep.subr.mxu0 0.0
      %204 = vmatpush1.msra.mxu0 %v175
      %205 = vmatprep.subr.mxu0 0.0
      %206 = vmatpush1.msra.mxu0 %v176
      %207 = vmatprep.subr.mxu0 0.0
      %208 = vmatpush1.msra.mxu0 %v177
      %209 = vmatprep.subr.mxu0 0.0
      %210 = vmatpush1.msra.mxu0 %v178
      %211 = vmatprep.subr.mxu0 0.0
      %212 = vmatpush1.msra.mxu0 %v179
      %213 = vmatprep.subr.mxu0 0.0
      %214 = vmatpush1.msra.mxu0 %v180
      %215 = vmatprep.subr.mxu0 0.0
      %216 = vmatpush1.msra.mxu0 %v181
      %217 = vmatprep.subr.mxu0 0.0
      %218 = vmatpush1.msra.mxu0 %v182
      %219 = vmatprep.subr.mxu0 0.0
      %220 = vmatpush1.msra.mxu0 %v183
      %221 = vmatprep.subr.mxu0 0.0
      %222 = vmatpush1.msra.mxu0 %v184
      %223 = vmatprep.subr.mxu0 0.0
      %224 = vmatpush1.msra.mxu0 %v185
      %225 = vmatprep.subr.mxu0 0.0
      %226 = vmatpush1.msra.mxu0 0.0
      %227 = vmatprep.subr.mxu0 0.0
      %228 = vmatpush1.msra.mxu0 0.0
      %229 = vmatprep.subr.mxu0 0.0
      %230 = vmatpush1.msra.mxu0 0.0
      %231 = vmatprep.subr.mxu0 0.0
      %232 = vmatpush1.msra.mxu0 0.0
      %233 = vmatprep.subr.mxu0 0.0
      %234 = vmatpush1.msra.mxu0 0.0
      %235 = vmatprep.subr.mxu0 0.0
      %236 = vmatpush1.msra.mxu0 0.0
      %237 = vmatprep.subr.mxu0 0.0
      %238 = vmatpush1.msra.mxu0 0.0
      %239 = vmatprep.subr.mxu0 0.0
      %240 = vmatpush1.msra.mxu0 0.0
      %241 = vmatprep.subr.mxu0 0.0
      %242 = vmatpush1.msra.mxu0 0.0
      %243 = vmatprep.subr.mxu0 0.0
      %244 = vmatpush1.msra.mxu0 0.0
      %245 = vmatprep.subr.mxu0 0.0
      %246 = vmatpush1.msra.mxu0 0.0
      %247 = vmatprep.subr.mxu0 0.0
      %248 = vmatpush1.msra.mxu0 0.0
      %249 = vmatprep.subr.mxu0 0.0
      %250 = vmatpush1.msra.mxu0 0.0
      %251 = vmatprep.subr.mxu0 0.0
      %252 = vmatpush1.msra.mxu0 0.0
      %253 = vmatprep.subr.mxu0 0.0
      %254 = vmatpush1.msra.mxu0 0.0
      %255 = vmatprep.subr.mxu0 0.0
      %256 = vmatpush1.msra.mxu0 0.0
      %257 = vmatprep.mubr.f32.mxu0 0.0
      %258 = vmatmul.mubr.f32.gmra.mrb[0].mxu0 %v169
      %v259 = vpop.f32.mrb[0].mxu0
      %v260 = vadd.f32 %v191, %v259
      %v261 = vpop.f32.mrb[0].mxu0
      %262 = vdwg.mxu0
      %263 = vst [vmem:[#allocation9] sm:$0xff] %v260
    $region41: #{tpu_custom_call.1} parent=1 // pred_fallthru
      _
    // Predicated region
    $region42: #{tpu_custom_call.1} parent=1 // pred_check
      _
    $region43: #{tpu_custom_call.1} parent=1 // pred_check_branch
      %265 = sbr.rel (0) target = $region45
    $region44: #{tpu_custom_call.1} parent=1 // pred_region
      %s267 = ssub.s32 128, 128
      %268 = vsyncadd [#allocation5], %s267
      %s270 = sshll.u32 [#allocation9], 4
      %s271 = int_to_ptr.vmem [resolvable:$true] %s270
      %273 = dma.vmem_to_hbm [thread:$0]  %s271, 128, %s5, [#allocation5]
    $region45: #{tpu_custom_call.1} parent=1 // pred_fallthru
      _
    // Predicated region
    $region46: #{tpu_custom_call.1} parent=1 // pred_check
      _
    $region47: #{tpu_custom_call.1} parent=1 // pred_check_branch
      %275 = sbr.rel (0) target = $region49
    $region48: #{tpu_custom_call.1} parent=1 // pred_region
      %276 = dma.done [#allocation5], 128
    $region49: #{tpu_custom_call.1} parent=1 // pred_fallthru
      _
    %277 = vsyncpa [#allocation4], 1
    %278 = vsyncpa [#allocation7], 1
    %279 = vsyncpa [#allocation5], 1

// kernel: tpu_custom_call.1
$region0: #{tpu_custom_call.1}
  #allocation0 [shape = 'u32[]', space=smem, size = 0x4, offset = 0x4, fixed_abs, tag = 'smem constant byte address 0x4 - core index']
  #allocation1 [shape = 'u32[144,128]{1,0:T(1,128)}', space=vmem, size = 0x12000, scoped, tag = 'internal scratch']
  #allocation2 [shape = 'f32[8,128]{1,0:T(8,128)}', space=vmem, size = 0x1000, scoped, tag = 'scratch operand']
  %s0 = inlined_call_operand.hbm [shape: f32[8,128], index: 0, kind: input, shape index: {}]
  %s1 = inlined_call_operand.hbm [shape: f32[128,128], index: 1, kind: input, shape index: {}]
  %s2 = inlined_call_operand.vmem [shape: f32[1,128], index: 2, kind: input, shape index: {}]
  %s3 = inlined_call_operand.hbm [shape: f32[128,128], index: 3, kind: input, shape index: {}]
  %s4 = inlined_call_operand.vmem [shape: f32[1,128], index: 4, kind: input, shape index: {}]
  %s5 = inlined_call_operand.hbm [shape: f32[8,128], index: 5, kind: output, shape index: {}]
  %s6 = sld [smem:[#allocation0]]
  $region50: #{tpu_custom_call.1} parent=0
    _
  %s8 = ssub.s32 1, %s6
  %s9 = scalar_select 0, %s8, %s6
  $region1: #{tpu_custom_call.1} parent=0
    #allocation3 [shape = 'u8[4096]{0}', space=vmem, size = 0x1000, scoped, tag = 'input window, operand 0, single buffered']
    #allocation4 [shape = 's32[1]{0}', space=sflag, size = 0x4, scoped, tag = 'scoped memory for tpu_custom_call.1']
    #allocation5 [shape = 's32[1]{0}', space=sflag, size = 0x4, scoped, tag = 'scoped memory for tpu_custom_call.1']
    #allocation6 [shape = 'u8[65536]{0}', space=vmem, size = 0x10000, scoped, tag = 'input window, operand 1, single buffered']
    #allocation7 [shape = 's32[1]{0}', space=sflag, size = 0x4, scoped, tag = 'scoped memory for tpu_custom_call.1']
    #allocation8 [shape = 'u8[65536]{0}', space=vmem, size = 0x10000, scoped, tag = 'input window, operand 3, single buffered']
    #allocation9 [shape = 'u8[4096]{0}', space=vmem, size = 0x1000, scoped, tag = 'output window, operand 0, single buffered']
    %10 = vsyncpa [#allocation4], 0
    %11 = vsyncpa [#allocation7], 0
    %12 = vsyncpa [#allocation5], 0
    // Predicated region
    $region2: #{tpu_custom_call.1} parent=1 // pred_check
      _
    $region3: #{tpu_custom_call.1} parent=1 // pred_check_branch
      %14 = sbr.rel (0) target = $region5
    $region4: #{tpu_custom_call.1} parent=1 // pred_region
      %s16 = ssub.s32 128, 128
      %17 = vsyncadd [#allocation4], %s16
      %s19 = sshll.u32 [#allocation3], 4
      %s20 = int_to_ptr.vmem [resolvable:$true] %s19
      %22 = dma.hbm_to_vmem [thread:$0]  %s0, 128, %s20, [#allocation4]
    $region5: #{tpu_custom_call.1} parent=1 // pred_fallthru
      _
    // Predicated region
    $region6: #{tpu_custom_call.1} parent=1 // pred_check
      _
    $region7: #{tpu_custom_call.1} parent=1 // pred_check_branch
      %24 = sbr.rel (0) target = $region9
    $region8: #{tpu_custom_call.1} parent=1 // pred_region
      %s26 = ssub.s32 2048, 2048
      %27 = vsyncadd [#allocation7], %s26
      %s28 = sshll.u32 [#allocation6], 4
      %s29 = int_to_ptr.vmem [resolvable:$true] %s28
      %34 = dma.hbm_to_vmem [thread:$0]  %s1, 2048, %s29, [#allocation7], 128, 128, 8
    $region9: #{tpu_custom_call.1} parent=1 // pred_fallthru
      _
    // Predicated region
    $region10: #{tpu_custom_call.1} parent=1 // pred_check
      _
    $region11: #{tpu_custom_call.1} parent=1 // pred_check_branch
      %36 = sbr.rel (0) target = $region13
    $region12: #{tpu_custom_call.1} parent=1 // pred_region
      _
    $region13: #{tpu_custom_call.1} parent=1 // pred_fallthru
      _
    // Predicated region
    $region14: #{tpu_custom_call.1} parent=1 // pred_check
      _
    $region15: #{tpu_custom_call.1} parent=1 // pred_check_branch
      %38 = sbr.rel (0) target = $region17
    $region16: #{tpu_custom_call.1} parent=1 // pred_region
      %s40 = ssub.s32 2048, 2048
      %41 = vsyncadd [#allocation7], %s40
      %s42 = sshll.u32 [#allocation8], 4
      %s43 = int_to_ptr.vmem [resolvable:$true] %s42
      %48 = dma.hbm_to_vmem [thread:$0]  %s3, 2048, %s43, [#allocation7], 128, 128, 8
    $region17: #{tpu_custom_call.1} parent=1 // pred_fallthru
      _
    // Predicated region
    $region18: #{tpu_custom_call.1} parent=1 // pred_check
      _
    $region19: #{tpu_custom_call.1} parent=1 // pred_check_branch
      %50 = sbr.rel (0) target = $region21
    $region20: #{tpu_custom_call.1} parent=1 // pred_region
      _
    $region21: #{tpu_custom_call.1} parent=1 // pred_fallthru
      _
    // Predicated region
    $region22: #{tpu_custom_call.1} parent=1 // pred_check
      _
    $region23: #{tpu_custom_call.1} parent=1 // pred_check_branch
      %52 = sbr.rel (0) target = $region25
    $region24: #{tpu_custom_call.1} parent=1 // pred_region
      %53 = dma.done [#allocation4], 128
    $region25: #{tpu_custom_call.1} parent=1 // pred_fallthru
      _
    // Predicated region
    $region26: #{tpu_custom_call.1} parent=1 // pred_check
      _
    $region27: #{tpu_custom_call.1} parent=1 // pred_check_branch
      %55 = sbr.rel (0) target = $region29
    $region28: #{tpu_custom_call.1} parent=1 // pred_region
      %56 = dma.done [#allocation7], 2048
    $region29: #{tpu_custom_call.1} parent=1 // pred_fallthru
      _
    // Predicated region
    $region30: #{tpu_custom_call.1} parent=1 // pred_check
      _
    $region31: #{tpu_custom_call.1} parent=1 // pred_check_branch
      %58 = sbr.rel (0) target = $region33
    $region32: #{tpu_custom_call.1} parent=1 // pred_region
      %59 = dma.done [#allocation7], 2048
    $region33: #{tpu_custom_call.1} parent=1 // pred_fallthru
      _
    %p60 = scmp.eq.s32.totalorder 0, 0
    // Predicated region
    $region34: #{tpu_custom_call.1} parent=1 // pred_check
      %p61 = pneg %p60
    $region35: #{tpu_custom_call.1} parent=1 // pred_check_branch
      %63 = sbr.rel (%p61) target = $region37
    $region36: #{tpu_custom_call.1} parent=1 // pred_region
      %64 = vst [vmem:[#allocation2] sm:$0xff] 0.0
    $region37: #{tpu_custom_call.1} parent=1 // pred_fallthru
      _
    %v65 = vld [vmem:[#allocation2] sm:$0xff]
    %v66 = vld [vmem:[#allocation3] sm:$0xff]
    %v67 = vld [vmem:[#allocation6] sm:$0xff]
    %v68 = vld [vmem:[#allocation6 + $0x8] sm:$0xff]
    %v69 = vld [vmem:[#allocation6 + $0x10] sm:$0xff]
    %v70 = vld [vmem:[#allocation6 + $0x18] sm:$0xff]
    %v71 = vld [vmem:[#allocation6 + $0x20] sm:$0xff]
    %v72 = vld [vmem:[#allocation6 + $0x28] sm:$0xff]
    %v73 = vld [vmem:[#allocation6 + $0x30] sm:$0xff]
    %v74 = vld [vmem:[#allocation6 + $0x38] sm:$0xff]
    %v75 = vld [vmem:[#allocation6 + $0x40] sm:$0xff]
    %v76 = vld [vmem:[#allocation6 + $0x48] sm:$0xff]
    %v77 = vld [vmem:[#allocation6 + $0x50] sm:$0xff]
    %v78 = vld [vmem:[#allocation6 + $0x58] sm:$0xff]
    %v79 = vld [vmem:[#allocation6 + $0x60] sm:$0xff]
    %v80 = vld [vmem:[#allocation6 + $0x68] sm:$0xff]
    %v81 = vld [vmem:[#allocation6 + $0x70] sm:$0xff]
    %v82 = vld [vmem:[#allocation6 + $0x78] sm:$0xff]
    %83 = vmatprep.subr.mxu0 0.0
    %84 = vmatpush1.msra.mxu0 %v67
    %85 = vmatprep.subr.mxu0 0.0
    %86 = vmatpush1.msra.mxu0 %v68
    %87 = vmatprep.subr.mxu0 0.0
    %88 = vmatpush1.msra.mxu0 %v69
    %89 = vmatprep.subr.mxu0 0.0
    %90 = vmatpush1.msra.mxu0 %v70
    %91 = vmatprep.subr.mxu0 0.0
    %92 = vmatpush1.msra.mxu0 %v71
    %93 = vmatprep.subr.mxu0 0.0
    %94 = vmatpush1.msra.mxu0 %v72
    %95 = vmatprep.subr.mxu0 0.0
    %96 = vmatpush1.msra.mxu0 %v73
    %97 = vmatprep.subr.mxu0 0.0
    %98 = vmatpush1.msra.mxu0 %v74
    %99 = vmatprep.subr.mxu0 0.0
    %100 = vmatpush1.msra.mxu0 %v75
    %101 = vmatprep.subr.mxu0 0.0
    %102 = vmatpush1.msra.mxu0 %v76
    %103 = vmatprep.subr.mxu0 0.0
    %104 = vmatpush1.msra.mxu0 %v77
    %105 = vmatprep.subr.mxu0 0.0
    %106 = vmatpush1.msra.mxu0 %v78
    %107 = vmatprep.subr.mxu0 0.0
    %108 = vmatpush1.msra.mxu0 %v79
    %109 = vmatprep.subr.mxu0 0.0
    %110 = vmatpush1.msra.mxu0 %v80
    %111 = vmatprep.subr.mxu0 0.0
    %112 = vmatpush1.msra.mxu0 %v81
    %113 = vmatprep.subr.mxu0 0.0
    %114 = vmatpush1.msra.mxu0 %v82
    %115 = vmatprep.subr.mxu0 0.0
    %116 = vmatpush1.msra.mxu0 0.0
    %117 = vmatprep.subr.mxu0 0.0
    %118 = vmatpush1.msra.mxu0 0.0
    %119 = vmatprep.subr.mxu0 0.0
    %120 = vmatpush1.msra.mxu0 0.0
    %121 = vmatprep.subr.mxu0 0.0
    %122 = vmatpush1.msra.mxu0 0.0
    %123 = vmatprep.subr.mxu0 0.0
    %124 = vmatpush1.msra.mxu0 0.0
    %125 = vmatprep.subr.mxu0 0.0
    %126 = vmatpush1.msra.mxu0 0.0
    %127 = vmatprep.subr.mxu0 0.0
    %128 = vmatpush1.msra.mxu0 0.0
    %129 = vmatprep.subr.mxu0 0.0
    %130 = vmatpush1.msra.mxu0 0.0
    %131 = vmatprep.subr.mxu0 0.0
    %132 = vmatpush1.msra.mxu0 0.0
    %133 = vmatprep.subr.mxu0 0.0
    %134 = vmatpush1.msra.mxu0 0.0
    %135 = vmatprep.subr.mxu0 0.0
    %136 = vmatpush1.msra.mxu0 0.0
    %137 = vmatprep.subr.mxu0 0.0
    %138 = vmatpush1.msra.mxu0 0.0
    %139 = vmatprep.subr.mxu0 0.0
    %140 = vmatpush1.msra.mxu0 0.0
    %141 = vmatprep.subr.mxu0 0.0
    %142 = vmatpush1.msra.mxu0 0.0
    %143 = vmatprep.subr.mxu0 0.0
    %144 = vmatpush1.msra.mxu0 0.0
    %145 = vmatprep.subr.mxu0 0.0
    %146 = vmatpush1.msra.mxu0 0.0
    %147 = vmatprep.mubr.f32.mxu0 0.0
    %148 = vmatmul.mubr.f32.gmra.mrb[0].mxu0 %v66
    %v149 = vpop.f32.mrb[0].mxu0
    %v150 = vadd.f32 0.0, %v149
    %v151 = vpop.f32.mrb[0].mxu0
    %152 = vdwg.mxu0
    %v153 = vadd.f32 %v65, %v150
    %154 = vst [vmem:[#allocation2] sm:$0xff] %v153
    // Predicated region
    $region38: #{tpu_custom_call.1} parent=1 // pred_check
      %p155 = pneg %p60
    $region39: #{tpu_custom_call.1} parent=1 // pred_check_branch
      %157 = sbr.rel (%p155) target = $region41
    $region40: #{tpu_custom_call.1} parent=1 // pred_region
      %v158 = vld [vmem:[#allocation2] sm:$0xff]
      %v159 = vld [vmem:[%s2] sm:$0x1]
      %v161 = vlaneseq
      %v162 = vshrl.u32 %v161, 7
      %v163 = vsub.s32 0, %v162
      %v164 = vrot.slane %v159, %v163
      %v166 = vadd.f32 %v158, %v164
      %v167 = vmax.f32 %v166, 0.0
      %168 = vst [vmem:[#allocation2] sm:$0xff] %v167
      %v169 = vld [vmem:[#allocation2] sm:$0xff]
      %v170 = vld [vmem:[#allocation8] sm:$0xff]
      %v171 = vld [vmem:[#allocation8 + $0x8] sm:$0xff]
      %v172 = vld [vmem:[#allocation8 + $0x10] sm:$0xff]
      %v173 = vld [vmem:[#allocation8 + $0x18] sm:$0xff]
      %v174 = vld [vmem:[#allocation8 + $0x20] sm:$0xff]
      %v175 = vld [vmem:[#allocation8 + $0x28] sm:$0xff]
      %v176 = vld [vmem:[#allocation8 + $0x30] sm:$0xff]
      %v177 = vld [vmem:[#allocation8 + $0x38] sm:$0xff]
      %v178 = vld [vmem:[#allocation8 + $0x40] sm:$0xff]
      %v179 = vld [vmem:[#allocation8 + $0x48] sm:$0xff]
      %v180 = vld [vmem:[#allocation8 + $0x50] sm:$0xff]
      %v181 = vld [vmem:[#allocation8 + $0x58] sm:$0xff]
      %v182 = vld [vmem:[#allocation8 + $0x60] sm:$0xff]
      %v183 = vld [vmem:[#allocation8 + $0x68] sm:$0xff]
      %v184 = vld [vmem:[#allocation8 + $0x70] sm:$0xff]
      %v185 = vld [vmem:[#allocation8 + $0x78] sm:$0xff]
      %v186 = vld [vmem:[%s4] sm:$0x1]
      %v188 = vlaneseq
      %v189 = vshrl.u32 %v188, 7
      %v190 = vsub.s32 0, %v189
      %v191 = vrot.slane %v186, %v190
      %193 = vmatprep.subr.mxu0 0.0
      %194 = vmatpush1.msra.mxu0 %v170
      %195 = vmatprep.subr.mxu0 0.0
      %196 = vmatpush1.msra.mxu0 %v171
      %197 = vmatprep.subr.mxu0 0.0
      %198 = vmatpush1.msra.mxu0 %v172
      %199 = vmatprep.subr.mxu0 0.0
      %200 = vmatpush1.msra.mxu0 %v173
      %201 = vmatprep.subr.mxu0 0.0
      %202 = vmatpush1.msra.mxu0 %v174
      %203 = vmatprep.subr.mxu0 0.0
      %204 = vmatpush1.msra.mxu0 %v175
      %205 = vmatprep.subr.mxu0 0.0
      %206 = vmatpush1.msra.mxu0 %v176
      %207 = vmatprep.subr.mxu0 0.0
      %208 = vmatpush1.msra.mxu0 %v177
      %209 = vmatprep.subr.mxu0 0.0
      %210 = vmatpush1.msra.mxu0 %v178
      %211 = vmatprep.subr.mxu0 0.0
      %212 = vmatpush1.msra.mxu0 %v179
      %213 = vmatprep.subr.mxu0 0.0
      %214 = vmatpush1.msra.mxu0 %v180
      %215 = vmatprep.subr.mxu0 0.0
      %216 = vmatpush1.msra.mxu0 %v181
      %217 = vmatprep.subr.mxu0 0.0
      %218 = vmatpush1.msra.mxu0 %v182
      %219 = vmatprep.subr.mxu0 0.0
      %220 = vmatpush1.msra.mxu0 %v183
      %221 = vmatprep.subr.mxu0 0.0
      %222 = vmatpush1.msra.mxu0 %v184
      %223 = vmatprep.subr.mxu0 0.0
      %224 = vmatpush1.msra.mxu0 %v185
      %225 = vmatprep.subr.mxu0 0.0
      %226 = vmatpush1.msra.mxu0 0.0
      %227 = vmatprep.subr.mxu0 0.0
      %228 = vmatpush1.msra.mxu0 0.0
      %229 = vmatprep.subr.mxu0 0.0
      %230 = vmatpush1.msra.mxu0 0.0
      %231 = vmatprep.subr.mxu0 0.0
      %232 = vmatpush1.msra.mxu0 0.0
      %233 = vmatprep.subr.mxu0 0.0
      %234 = vmatpush1.msra.mxu0 0.0
      %235 = vmatprep.subr.mxu0 0.0
      %236 = vmatpush1.msra.mxu0 0.0
      %237 = vmatprep.subr.mxu0 0.0
      %238 = vmatpush1.msra.mxu0 0.0
      %239 = vmatprep.subr.mxu0 0.0
      %240 = vmatpush1.msra.mxu0 0.0
      %241 = vmatprep.subr.mxu0 0.0
      %242 = vmatpush1.msra.mxu0 0.0
      %243 = vmatprep.subr.mxu0 0.0
      %244 = vmatpush1.msra.mxu0 0.0
      %245 = vmatprep.subr.mxu0 0.0
      %246 = vmatpush1.msra.mxu0 0.0
      %247 = vmatprep.subr.mxu0 0.0
      %248 = vmatpush1.msra.mxu0 0.0
      %249 = vmatprep.subr.mxu0 0.0
      %250 = vmatpush1.msra.mxu0 0.0
      %251 = vmatprep.subr.mxu0 0.0
      %252 = vmatpush1.msra.mxu0 0.0
      %253 = vmatprep.subr.mxu0 0.0
      %254 = vmatpush1.msra.mxu0 0.0
      %255 = vmatprep.subr.mxu0 0.0
      %256 = vmatpush1.msra.mxu0 0.0
      %257 = vmatprep.mubr.f32.mxu0 0.0
      %258 = vmatmul.mubr.f32.gmra.mrb[0].mxu0 %v169
      %v259 = vpop.f32.mrb[0].mxu0
      %v260 = vadd.f32 %v191, %v259
      %v261 = vpop.f32.mrb[0].mxu0
      %262 = vdwg.mxu0
      %263 = vst [vmem:[#allocation9] sm:$0xff] %v260
    $region41: #{tpu_custom_call.1} parent=1 // pred_fallthru
      _
    // Predicated region
    $region42: #{tpu_custom_call.1} parent=1 // pred_check
      _
    $region43: #{tpu_custom_call.1} parent=1 // pred_check_branch
      %265 = sbr.rel (0) target = $region45
    $region44: #{tpu_custom_call.1} parent=1 // pred_region
      %s267 = ssub.s32 128, 128
      %268 = vsyncadd [#allocation5], %s267
      %s270 = sshll.u32 [#allocation9], 4
      %s271 = int_to_ptr.vmem [resolvable:$true] %s270
      %273 = dma.vmem_to_hbm [thread:$0]  %s271, 128, %s5, [#allocation5]
    $region45: #{tpu_custom_call.1} parent=1 // pred_fallthru
      _
    // Predicated region
    $region46: #{tpu_custom_call.1} parent=1 // pred_check
      _
    $region47: #{tpu_custom_call.1} parent=1 // pred_check_branch
      %275 = sbr.rel (0) target = $region49
    $region48: #{tpu_custom_call.1} parent=1 // pred_region
      %276 = dma.done [#allocation5], 128
    $region49: #{tpu_custom_call.1} parent=1 // pred_fallthru
      _
    %277 = vsyncpa [#allocation4], 1
    %278 = vsyncpa [#allocation7], 1
    %279 = vsyncpa [#allocation5], 1

</llo_original>
